<compile_context>
chip_gen: v5e
topology: v5e:2x2
jax: 0.10.0
libtpu: 0.0.40
codegen_flags: <defaults>
</compile_context>

<pallas_src>
import functools

import jax
import jax.numpy as jnp
from jax.experimental import pallas as pl
from jax.experimental.pallas import tpu as pltpu

BN_EPS = 1e-5


# ---------------------------------------------------------------------------
# Kernel
# ---------------------------------------------------------------------------
def _moe_kernel(num_experts, num_classes, eh,
                x_ref, wf_ref, bf_ref, w2_ref, b2_ref, out_ref):
    E, C, EH = num_experts, num_classes, eh
    x = x_ref[...]                                                     # (tb, D) f32

    # ---- fused matmul: [hidden | gating logits] = x @ [w1_cat | wg] + [b1 | bg] ----
    z = jnp.dot(x, wf_ref[...], preferred_element_type=jnp.float32) + bf_ref[...]   # (tb, EH+E)
    hidden = z[:, :EH]                                                 # 128-aligned slice
    logits = z[:, EH:EH + E]                                           # (tb, E)

    # ---- gating softmax over the expert axis (exact divide) ----
    logits = logits - jnp.max(logits, axis=1, keepdims=True)
    exps = jnp.exp(logits)
    gates = exps / jnp.sum(exps, axis=1, keepdims=True)                # (tb, E)

    # ---- all experts: ReLU -> fc2(+BN2 folded) block-diagonal ----
    h = jnp.maximum(hidden, 0.0)                                       # dropout = identity (eval)
    eo = jnp.dot(h, w2_ref[...], preferred_element_type=jnp.float32) + b2_ref[...]  # (tb, E*C)

    # ---- mixture: sum_e gates[:, e] * eo[:, e*C:(e+1)*C] ----
    mix = jnp.zeros((x.shape[0], C), jnp.float32)
    for e in range(E):                                                 # static unroll, E small
        mix = mix + gates[:, e:e + 1] * eo[:, e * C:(e + 1) * C]

    # ---- single merged output slab: [gates | mix | eo] ----
    out_ref[...] = jnp.concatenate([gates, mix, eo], axis=1)


# ---------------------------------------------------------------------------
# Param prep: fold BN into weights, fuse experts + gating into the lane axis.
# Call ONCE per weight update and reuse the result (hoisted out of moe_forward).
# ---------------------------------------------------------------------------
def prepare_fused_params(p):
    E, D, H = p["w1"].shape
    C = p["w2"].shape[2]

    # BN1 fold: y = (x@W1) * s1 + sh1, s1 = g1*rsqrt(v1+eps), sh1 = b1 - m1*s1
    s1 = p["g1"] * jax.lax.rsqrt(p["v1"] + BN_EPS)                     # (E, H)
    sh1 = p["b1"] - p["m1"] * s1                                       # (E, H)
    w1f = p["w1"] * s1[:, None, :]                                     # (E, D, H)
    w1_cat = jnp.transpose(w1f, (1, 0, 2)).reshape(D, E * H)           # (D, E*H)
    b1_cat = sh1.reshape(1, E * H)                                     # (1, E*H)

    # Gating weight appended after the fc1 slab -> one fused (D, E*H + E) matmul.
    wf = jnp.concatenate([w1_cat, p["wg"]], axis=1)                    # (D, E*H + E)
    bf = jnp.concatenate([b1_cat, p["bg"]], axis=1)                    # (1, E*H + E)

    # BN2 fold + block-diagonal fc2
    s2 = p["g2"] * jax.lax.rsqrt(p["v2"] + BN_EPS)                     # (E, C)
    sh2 = p["b2"] - p["m2"] * s2                                       # (E, C)
    w2f = p["w2"] * s2[:, None, :]                                     # (E, H, C)
    w2_blk = jax.scipy.linalg.block_diag(*[w2f[e] for e in range(E)])  # (E*H, E*C)
    b2_cat = sh2.reshape(1, E * C)                                     # (1, E*C)

    return {"wf": wf, "bf": bf, "w2_blk": w2_blk, "b2_cat": b2_cat,
            "E": E, "D": D, "H": H, "C": C}


def _choose_tiling(B):
    """Pick (tile_b, padded_B).

    Prefer large tiles (amortize the ~0.35 us per-grid-step fixed overhead) while keeping
    >= 2 grid steps whenever the batch allows so the 'parallel' axis can shard across
    v7x's two TensorCores.  Batch is padded to a tile multiple (sublane-aligned)."""
    Bp = max(8, -(-B // 8) * 8)
    if Bp <= 8:
        return Bp, Bp                       # tiny batch: single block
    cap = min(2048, Bp // 2)                # at least 2 steps, tile <= 2048
    tb = 8
    while tb * 2 <= cap:
        tb *= 2
    Bp = -(-Bp // tb) * tb                  # pad batch up to a tile multiple
    return tb, Bp


# ---------------------------------------------------------------------------
# Wrapper
# ---------------------------------------------------------------------------
def moe_forward(x, fp):
    """x: (B, D) f32; fp: output of prepare_fused_params.
    Returns (mixture (B,C), gates (B,E), expert_outputs (B,E,C))."""
    B, D = x.shape
    E, H, C = fp["E"], fp["H"], fp["C"]
    EH, EC = E * H, E * C
    OUT_W = E + C + EC

    tb, Bp = _choose_tiling(B)
    if Bp != B:
        x = jnp.pad(x, ((0, Bp - B), (0, 0)))
    grid = (Bp // tb,)

    # Weights/biases stay VMEM-resident across batch tiles (constant block index).
    # TODO(synk): pipeline_mode=pl.Buffered(1) on weight specs to halve weight VMEM on v7x.
    def const(shape):
        return pl.BlockSpec(shape, lambda i: (0, 0))

    out = pl.pallas_call(
        functools.partial(_moe_kernel, E, C, EH),
        out_shape=jax.ShapeDtypeStruct((Bp, OUT_W), jnp.float32),
        grid=grid,
        in_specs=[pl.BlockSpec((tb, D), lambda i: (i, 0)),   # x tiled over batch
                  const((D, EH + E)),                        # [w1_cat | wg]
                  const((1, EH + E)),                        # [b1_cat | bg]
                  const((EH, EC)),                           # block-diagonal fc2
                  const((1, EC))],                           # b2_cat
        out_specs=pl.BlockSpec((tb, OUT_W), lambda i: (i, 0)),
        compiler_params=pltpu.CompilerParams(
            dimension_semantics=("parallel",)),
    )(x, fp["wf"], fp["bf"], fp["w2_blk"], fp["b2_cat"])

    out = out[:B]                                            # drop batch padding
    gates = out[:, :E]
    mix = out[:, E:E + C]
    expert_outputs = out[:, E + C:].reshape(B, E, C)         # free reshape, no HBM transpose
    return mix, gates, expert_outputs


# ---------------------------------------------------------------------------
# Synthetic params + pure-JAX reference (PyTorch eval-mode semantics)
# ---------------------------------------------------------------------------
def init_params(key, input_dim, hidden_dim, num_experts, num_classes):
    """Deterministic synthetic parameters matching the PyTorch module's shapes.
    Linear weights are stored pre-transposed to (in, out)."""
    ks = jax.random.split(key, 12)
    p = {
        "wg": jax.random.normal(ks[0], (input_dim, num_experts), jnp.float32) * 0.1,
        "bg": jax.random.normal(ks[1], (1, num_experts), jnp.float32) * 0.1,
        "w1": jax.random.normal(ks[2], (num_experts, input_dim, hidden_dim), jnp.float32) * 0.1,
        "g1": 1.0 + 0.1 * jax.random.normal(ks[3], (num_experts, hidden_dim), jnp.float32),
        "b1": 0.1 * jax.random.normal(ks[4], (num_experts, hidden_dim), jnp.float32),
        "m1": 0.1 * jax.random.normal(ks[5], (num_experts, hidden_dim), jnp.float32),
        "v1": 0.5 + jax.random.uniform(ks[6], (num_experts, hidden_dim), jnp.float32),
        "w2": jax.random.normal(ks[7], (num_experts, hidden_dim, num_classes), jnp.float32) * 0.1,
        "g2": 1.0 + 0.1 * jax.random.normal(ks[8], (num_experts, num_classes), jnp.float32),
        "b2": 0.1 * jax.random.normal(ks[9], (num_experts, num_classes), jnp.float32),
        "m2": 0.1 * jax.random.normal(ks[10], (num_experts, num_classes), jnp.float32),
        "v2": 0.5 + jax.random.uniform(ks[11], (num_experts, num_classes), jnp.float32),
    }
    return p


def moe_reference(x, p):
    """Pure-JAX reference of the PyTorch forward (eval mode), un-fused weights."""
    logits = x @ p["wg"] + p["bg"]
    gates = jax.nn.softmax(logits, axis=1)
    outs = []
    E = p["w1"].shape[0]
    for e in range(E):
        h = x @ p["w1"][e]
        h = (h - p["m1"][e]) * jax.lax.rsqrt(p["v1"][e] + BN_EPS) * p["g1"][e] + p["b1"][e]
        h = jnp.maximum(h, 0.0)
        o = h @ p["w2"][e]
        o = (o - p["m2"][e]) * jax.lax.rsqrt(p["v2"][e] + BN_EPS) * p["g2"][e] + p["b2"][e]
        outs.append(o)
    eo = jnp.stack(outs, axis=1)                                     # (B, E, C)
    mix = jnp.sum(gates[:, :, None] * eo, axis=1)
    return mix, gates, eo


if __name__ == "__main__":
    B, D, H, E, C = 8, 32, 32, 4, 8    # E*H = 128 -> lane-dense fused hidden slab

    key = jax.random.PRNGKey(0)
    kx, kp = jax.random.split(key)
    x = jax.random.normal(kx, (B, D), jnp.float32)
    params = init_params(kp, D, H, E, C)

    # Fold BN + fuse experts/gating ONCE (hoisted out of the forward path).
    fused = prepare_fused_params(params)
    fused = jax.tree_util.tree_map(
        lambda a: jax.block_until_ready(a) if isinstance(a, jax.Array) else a, fused)

    mix, gates, eo = jax.block_until_ready(moe_forward(x, fused))

    mix_r, gates_r, eo_r = moe_reference(x, params)
    assert mix.shape == (B, C) and gates.shape == (B, E) and eo.shape == (B, E, C)
    assert jnp.allclose(gates, gates_r, atol=1e-5, rtol=1e-5)
    assert jnp.allclose(eo, eo_r, atol=1e-4, rtol=1e-4)
    assert jnp.allclose(mix, mix_r, atol=1e-4, rtol=1e-4)

    print("KERNEL_OK")
</pallas_src>

<mosaic_0001>
module attributes {stable_mosaic.version = 11 : i64} {
  func.func @_moe_kernel(%arg0: i32, %arg1: memref<8x32xf32, #tpu.memory_space<vmem>>, %arg2: memref<32x132xf32, #tpu.memory_space<vmem>>, %arg3: memref<1x132xf32, #tpu.memory_space<vmem>>, %arg4: memref<128x32xf32, #tpu.memory_space<vmem>>, %arg5: memref<1x32xf32, #tpu.memory_space<vmem>>, %arg6: memref<8x44xf32, #tpu.memory_space<vmem>>) attributes {dimension_semantics = [#tpu.dimension_semantics<parallel>], iteration_bounds = array<i64: 1>, scalar_prefetch = 0 : i64, scratch_operands = 0 : i64, tpu.core_type = #tpu.core_type<tc>, window_params = [{transform_indices = @transform_0, window_bounds = array<i64: 8, 32>}, {pipeline_mode = #tpu.pipeline_mode<synchronous>, transform_indices = @transform_1, window_bounds = array<i64: 32, 132>}, {pipeline_mode = #tpu.pipeline_mode<synchronous>, transform_indices = @transform_2, window_bounds = array<i64: 1, 132>}, {pipeline_mode = #tpu.pipeline_mode<synchronous>, transform_indices = @transform_3, window_bounds = array<i64: 128, 32>}, {pipeline_mode = #tpu.pipeline_mode<synchronous>, transform_indices = @transform_4, window_bounds = array<i64: 1, 32>}, {transform_indices = @transform_5, window_bounds = array<i64: 8, 44>}]} {
    %c0 = arith.constant 0 : index
    %c0_0 = arith.constant 0 : index
    %0 = vector.load %arg1[%c0, %c0_0] : memref<8x32xf32, #tpu.memory_space<vmem>>, vector<8x32xf32>
    %c0_1 = arith.constant 0 : index
    %c0_2 = arith.constant 0 : index
    %1 = vector.load %arg2[%c0_1, %c0_2] : memref<32x132xf32, #tpu.memory_space<vmem>>, vector<32x132xf32>
    %cst = arith.constant dense<0.000000e+00> : vector<8x132xf32>
    %2 = tpu.matmul %0, %1, %cst {dimension_numbers = #tpu.dot_dimension_numbers<[1], [0], [0], [1], [0, 0, 1, 1], [], []>} : vector<8x32xf32>, vector<32x132xf32>, vector<8x132xf32> -> vector<8x132xf32>
    %c0_3 = arith.constant 0 : index
    %c0_4 = arith.constant 0 : index
    %3 = vector.load %arg3[%c0_3, %c0_4] : memref<1x132xf32, #tpu.memory_space<vmem>>, vector<1x132xf32>
    %4 = vector.broadcast %3 : vector<1x132xf32> to vector<8x132xf32>
    %5 = arith.addf %2, %4 : vector<8x132xf32>
    %6 = vector.extract_strided_slice %5 {offsets = [0, 0], sizes = [8, 128], strides = [1, 1]} : vector<8x132xf32> to vector<8x128xf32>
    %7 = vector.extract_strided_slice %5 {offsets = [0, 128], sizes = [8, 4], strides = [1, 1]} : vector<8x132xf32> to vector<8x4xf32>
    %cst_5 = arith.constant dense<0xFF800000> : vector<8xf32>
    %8 = vector.multi_reduction <maximumf>, %7, %cst_5 [1] : vector<8x4xf32> to vector<8xf32>
    %9 = vector.shape_cast %8 : vector<8xf32> to vector<8x1xf32>
    %10 = vector.broadcast %9 : vector<8x1xf32> to vector<8x4xf32>
    %11 = arith.subf %7, %10 : vector<8x4xf32>
    %12 = math.exp %11 : vector<8x4xf32>
    %cst_6 = arith.constant dense<0.000000e+00> : vector<8xf32>
    %13 = vector.multi_reduction <add>, %12, %cst_6 [1] : vector<8x4xf32> to vector<8xf32>
    %14 = vector.shape_cast %13 : vector<8xf32> to vector<8x1xf32>
    %15 = vector.broadcast %14 : vector<8x1xf32> to vector<8x4xf32>
    %16 = arith.divf %12, %15 : vector<8x4xf32>
    %cst_7 = arith.constant 0.000000e+00 : f32
    %17 = vector.broadcast %cst_7 : f32 to vector<8x128xf32>
    %18 = arith.maximumf %6, %17 : vector<8x128xf32>
    %c0_8 = arith.constant 0 : index
    %c0_9 = arith.constant 0 : index
    %19 = vector.load %arg4[%c0_8, %c0_9] : memref<128x32xf32, #tpu.memory_space<vmem>>, vector<128x32xf32>
    %cst_10 = arith.constant dense<0.000000e+00> : vector<8x32xf32>
    %20 = tpu.matmul %18, %19, %cst_10 {dimension_numbers = #tpu.dot_dimension_numbers<[1], [0], [0], [1], [0, 0, 1, 1], [], []>} : vector<8x128xf32>, vector<128x32xf32>, vector<8x32xf32> -> vector<8x32xf32>
    %c0_11 = arith.constant 0 : index
    %c0_12 = arith.constant 0 : index
    %21 = vector.load %arg5[%c0_11, %c0_12] : memref<1x32xf32, #tpu.memory_space<vmem>>, vector<1x32xf32>
    %22 = vector.broadcast %21 : vector<1x32xf32> to vector<8x32xf32>
    %23 = arith.addf %20, %22 : vector<8x32xf32>
    %cst_13 = arith.constant 0.000000e+00 : f32
    %24 = vector.broadcast %cst_13 : f32 to vector<8x8xf32>
    %25 = vector.extract_strided_slice %16 {offsets = [0, 0], sizes = [8, 1], strides = [1, 1]} : vector<8x4xf32> to vector<8x1xf32>
    %26 = vector.extract_strided_slice %23 {offsets = [0, 0], sizes = [8, 8], strides = [1, 1]} : vector<8x32xf32> to vector<8x8xf32>
    %27 = vector.broadcast %25 : vector<8x1xf32> to vector<8x8xf32>
    %28 = arith.mulf %27, %26 : vector<8x8xf32>
    %29 = arith.addf %24, %28 : vector<8x8xf32>
    %30 = vector.extract_strided_slice %16 {offsets = [0, 1], sizes = [8, 1], strides = [1, 1]} : vector<8x4xf32> to vector<8x1xf32>
    %31 = vector.extract_strided_slice %23 {offsets = [0, 8], sizes = [8, 8], strides = [1, 1]} : vector<8x32xf32> to vector<8x8xf32>
    %32 = vector.broadcast %30 : vector<8x1xf32> to vector<8x8xf32>
    %33 = arith.mulf %32, %31 : vector<8x8xf32>
    %34 = arith.addf %29, %33 : vector<8x8xf32>
    %35 = vector.extract_strided_slice %16 {offsets = [0, 2], sizes = [8, 1], strides = [1, 1]} : vector<8x4xf32> to vector<8x1xf32>
    %36 = vector.extract_strided_slice %23 {offsets = [0, 16], sizes = [8, 8], strides = [1, 1]} : vector<8x32xf32> to vector<8x8xf32>
    %37 = vector.broadcast %35 : vector<8x1xf32> to vector<8x8xf32>
    %38 = arith.mulf %37, %36 : vector<8x8xf32>
    %39 = arith.addf %34, %38 : vector<8x8xf32>
    %40 = vector.extract_strided_slice %16 {offsets = [0, 3], sizes = [8, 1], strides = [1, 1]} : vector<8x4xf32> to vector<8x1xf32>
    %41 = vector.extract_strided_slice %23 {offsets = [0, 24], sizes = [8, 8], strides = [1, 1]} : vector<8x32xf32> to vector<8x8xf32>
    %42 = vector.broadcast %40 : vector<8x1xf32> to vector<8x8xf32>
    %43 = arith.mulf %42, %41 : vector<8x8xf32>
    %44 = arith.addf %39, %43 : vector<8x8xf32>
    %45 = tpu.concatenate %16, %44, %23 in 1 : vector<8x4xf32>, vector<8x8xf32>, vector<8x32xf32> -> vector<8x44xf32>
    %c0_14 = arith.constant 0 : index
    %c0_15 = arith.constant 0 : index
    %46 = vector.load %arg6[%c0_14, %c0_15] : memref<8x44xf32, #tpu.memory_space<vmem>>, vector<8x44xf32>
    tpu.vector_store %arg6[%c0_14, %c0_15], %45 {strides = array<i32>} : memref<8x44xf32, #tpu.memory_space<vmem>>, vector<8x44xf32>,
    return
  }
  func.func @transform_0(%arg0: i32) -> (i32, i32) {
    %c0_i32 = arith.constant 0 : i32
    %c0_i32_0 = arith.constant 0 : i32
    return %arg0, %c0_i32 : i32, i32
  }
  func.func @transform_1(%arg0: i32) -> (i32, i32) {
    %c0_i32 = arith.constant 0 : i32
    %c0_i32_0 = arith.constant 0 : i32
    %c0_i32_1 = arith.constant 0 : i32
    return %c0_i32, %c0_i32_0 : i32, i32
  }
  func.func @transform_2(%arg0: i32) -> (i32, i32) {
    %c0_i32 = arith.constant 0 : i32
    %c0_i32_0 = arith.constant 0 : i32
    %c0_i32_1 = arith.constant 0 : i32
    return %c0_i32, %c0_i32_0 : i32, i32
  }
  func.func @transform_3(%arg0: i32) -> (i32, i32) {
    %c0_i32 = arith.constant 0 : i32
    %c0_i32_0 = arith.constant 0 : i32
    %c0_i32_1 = arith.constant 0 : i32
    return %c0_i32, %c0_i32_0 : i32, i32
  }
  func.func @transform_4(%arg0: i32) -> (i32, i32) {
    %c0_i32 = arith.constant 0 : i32
    %c0_i32_0 = arith.constant 0 : i32
    %c0_i32_1 = arith.constant 0 : i32
    return %c0_i32, %c0_i32_0 : i32, i32
  }
  func.func @transform_5(%arg0: i32) -> (i32, i32) {
    %c0_i32 = arith.constant 0 : i32
    %c0_i32_0 = arith.constant 0 : i32
    return %arg0, %c0_i32 : i32, i32
  }
}

</mosaic_0001>

<llo_original>
// kernel: tpu_custom_call.1
$region0: #{tpu_custom_call.1}
  #allocation0 [shape = 'u32[]', space=smem, size = 0x4, offset = 0x4, fixed_abs, tag = 'smem constant byte address 0x4 - core index']
  #allocation1 [shape = 'u32[72,128]{1,0:T(1,128)}', space=vmem, size = 0x9000, scoped, tag = 'internal scratch']
  %s0 = inlined_call_operand.vmem [shape: f32[8,32], index: 0, kind: input, shape index: {}]
  %s1 = inlined_call_operand.vmem [shape: f32[32,132], index: 1, kind: input, shape index: {}]
  %s2 = inlined_call_operand.vmem [shape: f32[1,132], index: 2, kind: input, shape index: {}]
  %s3 = inlined_call_operand.vmem [shape: f32[128,32], index: 3, kind: input, shape index: {}]
  %s4 = inlined_call_operand.vmem [shape: f32[1,32], index: 4, kind: input, shape index: {}]
  %s5 = inlined_call_operand.hbm [shape: f32[8,44], index: 5, kind: output, shape index: {}]
  %s6 = sld [smem:[#allocation0]]
  $region30: #{tpu_custom_call.1} parent=0
    _
  %s8 = ssub.s32 1, %s6
  %s9 = scalar_select 0, %s8, %s6
  $region1: #{tpu_custom_call.1} parent=0
    #allocation2 [shape = 'u8[4096]{0}', space=vmem, size = 0x1000, scoped, tag = 'output window, operand 0, single buffered']
    #allocation3 [shape = 's32[1]{0}', space=sflag, size = 0x4, scoped, tag = 'scoped memory for tpu_custom_call.1']
    %10 = vsyncpa [#allocation3], 0
    // Predicated region
    $region2: #{tpu_custom_call.1} parent=1 // pred_check
      _
    $region3: #{tpu_custom_call.1} parent=1 // pred_check_branch
      %12 = sbr.rel (0) target = $region5
    $region4: #{tpu_custom_call.1} parent=1 // pred_region
      _
    $region5: #{tpu_custom_call.1} parent=1 // pred_fallthru
      _
    // Predicated region
    $region6: #{tpu_custom_call.1} parent=1 // pred_check
      _
    $region7: #{tpu_custom_call.1} parent=1 // pred_check_branch
      %14 = sbr.rel (0) target = $region9
    $region8: #{tpu_custom_call.1} parent=1 // pred_region
      _
    $region9: #{tpu_custom_call.1} parent=1 // pred_fallthru
      _
    // Predicated region
    $region10: #{tpu_custom_call.1} parent=1 // pred_check
      _
    $region11: #{tpu_custom_call.1} parent=1 // pred_check_branch
      %16 = sbr.rel (0) target = $region13
    $region12: #{tpu_custom_call.1} parent=1 // pred_region
      _
    $region13: #{tpu_custom_call.1} parent=1 // pred_fallthru
      _
    // Predicated region
    $region14: #{tpu_custom_call.1} parent=1 // pred_check
      _
    $region15: #{tpu_custom_call.1} parent=1 // pred_check_branch
      %18 = sbr.rel (0) target = $region17
    $region16: #{tpu_custom_call.1} parent=1 // pred_region
      _
    $region17: #{tpu_custom_call.1} parent=1 // pred_fallthru
      _
    // Predicated region
    $region18: #{tpu_custom_call.1} parent=1 // pred_check
      _
    $region19: #{tpu_custom_call.1} parent=1 // pred_check_branch
      %20 = sbr.rel (0) target = $region21
    $region20: #{tpu_custom_call.1} parent=1 // pred_region
      _
    $region21: #{tpu_custom_call.1} parent=1 // pred_fallthru
      _
    %v21 = vld [vmem:[%s0] sm:$0xff]
    %v22 = vld [vmem:[%s1] sm:$0xff]
    %v23 = vld [vmem:[%s1 + $0x8] sm:$0xff]
    %v24 = vld [vmem:[%s1 + $0x10] sm:$0xff]
    %v25 = vld [vmem:[%s1 + $0x18] sm:$0xff]
    %v26 = vld [vmem:[%s1 + $0x20] sm:$0xff]
    %v27 = vld [vmem:[%s1 + $0x28] sm:$0xff]
    %v28 = vld [vmem:[%s1 + $0x30] sm:$0xff]
    %v29 = vld [vmem:[%s1 + $0x38] sm:$0xff]
    %v30 = vld [vmem:[%s2] sm:$0x3]
    %v32 = vperm.slane %v30, 0
    %v33 = vperm.slane %v30, 1
    %vm36 = vcmask 261120
    %v38 = vsel %vm36, %v21, 0
    %40 = vmatpush.msra.mxu0 0.0
    %41 = vmatpush.msra.mxu0 0.0
    %42 = vmatpush.msra.mxu0 0.0
    %43 = vmatpush.msra.mxu0 0.0
    %44 = vmatpush.msra.mxu0 0.0
    %45 = vmatpush.msra.mxu0 0.0
    %46 = vmatpush.msra.mxu0 0.0
    %47 = vmatpush.msra.mxu0 0.0
    %48 = vmatpush.msra.mxu0 0.0
    %49 = vmatpush.msra.mxu0 0.0
    %50 = vmatpush.msra.mxu0 0.0
    %51 = vmatpush.msra.mxu0 0.0
    %52 = vmatpush.msra.mxu0 %v28
    %53 = vmatpush.msra.mxu0 %v26
    %54 = vmatpush.msra.mxu0 %v24
    %55 = vmatpush.msra.mxu0 %v22
    %56 = vmatmul.f32.gmra.mxu0 %v38
    %v57 = vpop.f32.mrf.mxu0
    %v58 = vadd.f32 %v32, %v57
    %59 = vdwg.mxu0
    %60 = vmatpush.msra.mxu0 0.0
    %61 = vmatpush.msra.mxu0 0.0
    %62 = vmatpush.msra.mxu0 0.0
    %63 = vmatpush.msra.mxu0 0.0
    %64 = vmatpush.msra.mxu0 0.0
    %65 = vmatpush.msra.mxu0 0.0
    %66 = vmatpush.msra.mxu0 0.0
    %67 = vmatpush.msra.mxu0 0.0
    %68 = vmatpush.msra.mxu0 0.0
    %69 = vmatpush.msra.mxu0 0.0
    %70 = vmatpush.msra.mxu0 0.0
    %71 = vmatpush.msra.mxu0 0.0
    %72 = vmatpush.msra.mxu0 %v29
    %73 = vmatpush.msra.mxu0 %v27
    %74 = vmatpush.msra.mxu0 %v25
    %75 = vmatpush.msra.mxu0 %v23
    %76 = vmatmul.f32.gmra.mxu0 %v38
    %v77 = vpop.f32.mrf.mxu0
    %v78 = vadd.f32 %v33, %v77
    %79 = vdwg.mxu0
    %vm80 = vcmask 31744
    %v81 = vsel %vm80, %v78, -inf
    %82 = vmax.xlane.f32.xlu0 %v81
    %v83 = vpop.xlane.xlu0 %82
    %v84 = vsub.f32 %v78, %v83
    %v85 = vmul.f32 %v84, 1.442695
    %v86 = vpow.pop %v85
    %v87 = vsel %vm80, %v86, 0.0
    %88 = vadd.xlane.f32.xlu0 %v87
    %v89 = vpop.xlane.xlu0 %88
    %v90 = vrcp.pop %v89
    %v91 = vmul.f32 %v89, %v90
    %v92 = vsub.f32 1.0, %v91
    %v93 = vmul.f32 %v90, %v92
    %v94 = vadd.f32 %v90, %v93
    %vm95 = vweird.f32 %v89
    %vm96 = vweird.f32 %v90
    %vm97 = vmor %vm95, %vm96
    %v98 = vsel %vm97, %v90, %v94
    %v99 = vand.u32 2147483647, %v89
    %vm100 = vcmp.eq.f32.partialorder %v99, 8.507059e+37
    %v101 = vand.u32 %v89, 2147483648
    %v102 = vor.u32 1.1754944e-38, %v101
    %v103 = vsel %vm100, %v102, %v98
    %v104 = vmul.f32 %v86, %v103
    %v105 = vmax.f32 %v58, 0.0
    %v106 = vld [vmem:[%s3] sm:$0xff]
    %v107 = vld [vmem:[%s3 + $0x8] sm:$0xff]
    %v108 = vld [vmem:[%s3 + $0x10] sm:$0xff]
    %v109 = vld [vmem:[%s3 + $0x18] sm:$0xff]
    %v110 = vld [vmem:[%s3 + $0x20] sm:$0xff]
    %v111 = vld [vmem:[%s3 + $0x28] sm:$0xff]
    %v112 = vld [vmem:[%s3 + $0x30] sm:$0xff]
    %v113 = vld [vmem:[%s3 + $0x38] sm:$0xff]
    %v114 = vld [vmem:[%s3 + $0x40] sm:$0xff]
    %v115 = vld [vmem:[%s3 + $0x48] sm:$0xff]
    %v116 = vld [vmem:[%s3 + $0x50] sm:$0xff]
    %v117 = vld [vmem:[%s3 + $0x58] sm:$0xff]
    %v118 = vld [vmem:[%s3 + $0x60] sm:$0xff]
    %v119 = vld [vmem:[%s3 + $0x68] sm:$0xff]
    %v120 = vld [vmem:[%s3 + $0x70] sm:$0xff]
    %v121 = vld [vmem:[%s3 + $0x78] sm:$0xff]
    %v122 = vld [vmem:[%s4] sm:$0x1]
    %v124 = vperm.slane %v122, 0
    %126 = vmatpush.msra.mxu0 %v121
    %127 = vmatpush.msra.mxu0 %v120
    %128 = vmatpush.msra.mxu0 %v119
    %129 = vmatpush.msra.mxu0 %v118
    %130 = vmatpush.msra.mxu0 %v117
    %131 = vmatpush.msra.mxu0 %v116
    %132 = vmatpush.msra.mxu0 %v115
    %133 = vmatpush.msra.mxu0 %v114
    %134 = vmatpush.msra.mxu0 %v113
    %135 = vmatpush.msra.mxu0 %v112
    %136 = vmatpush.msra.mxu0 %v111
    %137 = vmatpush.msra.mxu0 %v110
    %138 = vmatpush.msra.mxu0 %v109
    %139 = vmatpush.msra.mxu0 %v108
    %140 = vmatpush.msra.mxu0 %v107
    %141 = vmatpush.msra.mxu0 %v106
    %142 = vmatmul.f32.gmra.mxu0 %v105
    %v143 = vpop.f32.mrf.mxu0
    %v144 = vadd.f32 %v124, %v143
    %145 = vdwg.mxu0
    %147 = vset.pattern.permute.xlu0 0
    %148 = vperm.xlu0 %147, %v104
    %v149 = vpop.permute.xlu0 %148
    %v151 = vmul.f32 %v149, %v144
    %v152 = vadd.f32 %v151, 0.0
    %153 = vset.pattern.permute.xlu0 1
    %154 = vperm.xlu0 %153, %v104
    %v155 = vpop.permute.xlu0 %154
    %v157 = vmul.f32 %v155, %v144
    %159 = vrot.lane.b32.xlu0 %v157, 120
    %v160 = vpop.permute.xlu0 %159
    %v162 = vadd.f32 %v152, %v160
    %163 = vset.pattern.permute.xlu0 2
    %164 = vperm.xlu0 %163, %v104
    %v165 = vpop.permute.xlu0 %164
    %v167 = vmul.f32 %v165, %v144
    %169 = vrot.lane.b32.xlu0 %v167, 112
    %v170 = vpop.permute.xlu0 %169
    %v172 = vadd.f32 %v162, %v170
    %173 = vset.pattern.permute.xlu0 3
    %174 = vperm.xlu0 %173, %v104
    %v175 = vpop.permute.xlu0 %174
    %v177 = vmul.f32 %v175, %v144
    %179 = vrot.lane.b32.xlu0 %v177, 104
    %v180 = vpop.permute.xlu0 %179
    %v182 = vadd.f32 %v172, %v180
    %184 = vrot.lane.b32.xlu0 %v182, 4
    %v185 = vpop.permute.xlu0 %184
    %188 = vrot.lane.b32.xlu0 %v144, 12
    %v189 = vpop.permute.xlu0 %188
    %v191 = vsel %vm80, %v104, %v185
    %vm192 = vcmask 97280
    %v193 = vsel %vm192, %v191, %v189
    %vm194 = vcmask 359424
    %195 = vst.msk [vmem:[#allocation2] sm:$0xff] %vm194, %v193
    // Predicated region
    $region22: #{tpu_custom_call.1} parent=1 // pred_check
      _
    $region23: #{tpu_custom_call.1} parent=1 // pred_check_branch
      %197 = sbr.rel (0) target = $region25
    $region24: #{tpu_custom_call.1} parent=1 // pred_region
      %199 = vsyncadd [#allocation3], 0
      %s201 = sshll.u32 [#allocation2], 4
      %s202 = int_to_ptr.vmem [resolvable:$true] %s201
      %s203 = sshll.u32 %s5, 4
      %s204 = int_to_ptr.hbm [resolvable:$true] %s203
      %206 = dma.vmem_to_hbm [thread:$0]  %s202, 128, %s204, [#allocation3]
    $region25: #{tpu_custom_call.1} parent=1 // pred_fallthru
      _
    // Predicated region
    $region26: #{tpu_custom_call.1} parent=1 // pred_check
      _
    $region27: #{tpu_custom_call.1} parent=1 // pred_check_branch
      %208 = sbr.rel (0) target = $region29
    $region28: #{tpu_custom_call.1} parent=1 // pred_region
      %210 = dma.done [#allocation3], 128
    $region29: #{tpu_custom_call.1} parent=1 // pred_fallthru
      _
    %211 = vsyncpa [#allocation3], 1

</llo_original>
